<compile_context>
chip_gen: v7x
topology: tpu7x:2x2x1
jax: 0.10.0
libtpu: 0.0.40
codegen_flags: <defaults>
</compile_context>

<pallas_src>
import jax
import jax.numpy as jnp
from jax import lax
from jax.experimental import pallas as pl
from jax.experimental.pallas import tpu as pltpu


_NEG_INF = -1e30  # large-negative fill: avoids inf-inf NaNs in the online softmax


def _round_up(x, m):
    return ((x + m - 1) // m) * m


def _vmem_budget():
    """Usable per-core VMEM budget (bytes): ~85% of physical capacity."""
    cap = None
    try:
        cap = getattr(pltpu.get_tpu_info(), "vmem_capacity_bytes", None)
    except Exception:
        cap = None
    if not cap:
        cap = 64 << 20  # conservative fallback (v7x per-core VMEM)
    return int(cap * 0.85)


def _vmem_slab(tm, tn, v_pad, hidden, out_bytes):
    """VMEM residency estimate for the single-pass (resident slab) scheme."""
    return (2 * tm * hidden * 2            # x tile (bf16, double-buffered)
            + 2 * tn * hidden * 2          # weight tile (bf16, double-buffered)
            + 2 * tm * v_pad * out_bytes   # resident output slab (double-buffered)
            + 2 * tm * 128 * 4             # (tm,1) f32 stats scratch (lane-padded)
            + (2 << 20))                   # slop for Mosaic internal scratch


def _vmem_two_pass(tm, tn, hidden, out_bytes):
    """VMEM residency estimate for pass 1 of the two-pass scheme."""
    return (2 * tm * hidden * 2
            + 2 * tn * hidden * 2
            + 2 * tm * tn * out_bytes      # per-(i,j) raw-logit output tile
            + 2 * tm * 128 * 4             # (tm,1) lse output block
            + 2 * tm * 128 * 4             # stats scratch
            + (2 << 20))


def _pick_tiles(m, hidden, vocab, out_bytes, budget, *,
                force_two_pass=False, tm=None, tn=None):
    """Choose (tm, tn, v_pad, mode) within the per-core VMEM budget."""
    tm_cap = _round_up(m, 8)
    v_ru = _round_up(vocab, 128)
    # bf16 sublane packing prefers >=16 rows unless the whole (padded) M is 8.
    floor_tm = 8 if tm_cap <= 8 else 16

    # Vocab-rows tile of the weight. Cap the double-buffered weight tiles at
    # ~1/4 of the budget so huge hidden sizes don't starve the output slab.
    if tn is None:
        tn = min(512, v_ru)
        max_tn = (budget // 4) // (2 * hidden * 2)
        max_tn = max(128, (max_tn // 128) * 128)
        tn = max(min(tn, max_tn), min(128, v_ru))
    else:
        tn = max(128, _round_up(tn, 128))

    # Rows tile: weight-streaming arithmetic intensity == tm, so start large
    # and only shrink if the VMEM budget demands it.
    if tm is None:
        tm = min(1024, tm_cap)
        # Megacore (v7x): if M collapses to one big tile but there is enough
        # work for two, split so the "parallel" axis spans both TensorCores.
        if tm == tm_cap and tm_cap >= 512:
            tm = _round_up((tm_cap + 1) // 2, 8)
    else:
        tm = max(floor_tm, _round_up(min(tm, tm_cap), 8))

    while True:
        v_pad = _round_up(vocab, tn)
        if (not force_two_pass
                and _vmem_slab(tm, tn, v_pad, hidden, out_bytes) <= budget):
            return tm, tn, v_pad, "slab"
        if _vmem_two_pass(tm, tn, hidden, out_bytes) <= budget:
            return tm, tn, v_pad, "two_pass"
        if tm > floor_tm:
            tm = max(floor_tm, _round_up(tm // 2, 8))
        elif tn > 128:
            tn = max(128, ((tn // 2) // 128) * 128)
        else:
            return tm, tn, v_pad, "two_pass"   # best effort; let Mosaic try


def _make_fused_kernel(vocab, tn, nj, need_mask, mode):
    """Fused linear + online log-softmax kernel body.

    Grid = (M tiles, vocab tiles); vocab is the trailing "arbitrary" axis that
    carries the running max / sum-exp in small VMEM scratch.
      x_ref: (tm, H) bf16, resident across j.
      w_ref: (tn, H) bf16 weight tile (PyTorch (vocab, hidden) layout).
    mode == "slab":
      o_ref: (tm, V_pad) resident output slab; raw logits stashed per step and
             normalized in place on the last vocab step.
    mode == "two_pass":
      raw_ref: (tm, tn) raw-logit tile per (i, j); lse_ref: (tm, 1) f32.
    """

    def _update_stats(logits, m_ref, l_ref):
        m_prev = m_ref[...]
        m_new = jnp.maximum(m_prev, jnp.max(logits, axis=-1, keepdims=True))
        l_ref[...] = (l_ref[...] * jnp.exp(m_prev - m_new)
                      + jnp.sum(jnp.exp(logits - m_new), axis=-1, keepdims=True))
        m_ref[...] = m_new

    def _stats(logits, j, m_ref, l_ref):
        if need_mask:
            # Padded vocab columns only live in the last tile; keep the mask
            # ops (iota/compare/select) off the hot path of earlier steps.
            @pl.when(j < nj - 1)
            def _():
                _update_stats(logits, m_ref, l_ref)

            @pl.when(j == nj - 1)
            def _():
                col = (nj - 1) * tn + lax.broadcasted_iota(
                    jnp.int32, logits.shape, 1)
                _update_stats(jnp.where(col < vocab, logits, _NEG_INF),
                              m_ref, l_ref)
        else:
            _update_stats(logits, m_ref, l_ref)

    def _logits(x_ref, w_ref):
        # (tm, H) . (tn, H) -> (tm, tn), contracting the hidden dim of both.
        # Weight stays in its native (vocab, hidden) layout: contiguous row
        # DMA, no wrapper-side HBM transpose.
        # TODO(synk): if Mosaic emits a per-tile vxpose here (check
        # pl.lower_as_mlir), pre-transpose the static weight once instead.
        return lax.dot_general(
            x_ref[...], w_ref[...],
            dimension_numbers=(((1,), (1,)), ((), ())),
            preferred_element_type=jnp.float32)

    if mode == "slab":
        def kernel(x_ref, w_ref, o_ref, m_ref, l_ref):
            j = pl.program_id(1)

            @pl.when(j == 0)
            def _init():
                m_ref[...] = jnp.full(m_ref.shape, _NEG_INF, jnp.float32)
                l_ref[...] = jnp.zeros(l_ref.shape, jnp.float32)

            logits = _logits(x_ref, w_ref)
            _stats(logits, j, m_ref, l_ref)

            # Stash raw logits directly into the resident output slab
            # (no separate full-vocab f32 scratch).
            start = pl.multiple_of(j * tn, 128)
            o_ref[:, pl.ds(start, tn)] = logits.astype(o_ref.dtype)

            @pl.when(j == nj - 1)
            def _finalize():
                lse = m_ref[...] + jnp.log(l_ref[...])

                def body(jj, carry):
                    s = pl.multiple_of(jj * tn, 128)
                    blk = o_ref[:, pl.ds(s, tn)].astype(jnp.float32)
                    o_ref[:, pl.ds(s, tn)] = (blk - lse).astype(o_ref.dtype)
                    return carry

                lax.fori_loop(0, nj, body, 0, unroll=min(nj, 8))
    else:
        def kernel(x_ref, w_ref, raw_ref, lse_ref, m_ref, l_ref):
            j = pl.program_id(1)

            @pl.when(j == 0)
            def _init():
                m_ref[...] = jnp.full(m_ref.shape, _NEG_INF, jnp.float32)
                l_ref[...] = jnp.zeros(l_ref.shape, jnp.float32)

            logits = _logits(x_ref, w_ref)
            _stats(logits, j, m_ref, l_ref)
            raw_ref[...] = logits.astype(raw_ref.dtype)

            @pl.when(j == nj - 1)
            def _finalize():
                lse_ref[...] = m_ref[...] + jnp.log(l_ref[...])

    return kernel


def _sub_lse_kernel(raw_ref, lse_ref, o_ref):
    o_ref[...] = (raw_ref[...].astype(jnp.float32)
                  - lse_ref[...]).astype(o_ref.dtype)


def generator_forward(x, weight, *, out_dtype=jnp.float32,
                      compute_dtype=jnp.bfloat16,
                      tm=None, tn=None, force_two_pass=False):
    """Fused log_softmax(x @ weight.T, dim=-1) — the `Generator` forward.

    x:      [..., hidden]
    weight: [vocab, hidden]  (PyTorch nn.Linear layout, NOT pre-transposed)
    out_dtype=jnp.bfloat16 halves output HBM/VMEM when lower-precision
    log-probs are acceptable.  tm/tn override the automatic tile choice.
    """
    *lead, hidden = x.shape
    vocab, hidden_w = weight.shape
    assert hidden == hidden_w, "weight must be (vocab, hidden)"

    x2 = x.reshape(-1, hidden).astype(compute_dtype)
    w = weight.astype(compute_dtype)
    m = x2.shape[0]
    out_bytes = jnp.dtype(out_dtype).itemsize

    budget = _vmem_budget()
    tm, tn, v_pad, mode = _pick_tiles(m, hidden, vocab, out_bytes, budget,
                                      force_two_pass=force_two_pass,
                                      tm=tm, tn=tn)
    m_pad = _round_up(m, tm)
    ni, nj = m_pad // tm, v_pad // tn

    if m_pad != m:
        x2 = jnp.pad(x2, ((0, m_pad - m), (0, 0)))
    if v_pad != vocab:
        w = jnp.pad(w, ((0, v_pad - vocab), (0, 0)))

    need_mask = v_pad != vocab
    kernel = _make_fused_kernel(vocab, tn, nj, need_mask, mode)

    in_specs = [
        pl.BlockSpec((tm, hidden), lambda i, j: (i, 0)),   # x tile (resident over j)
        pl.BlockSpec((tn, hidden), lambda i, j: (j, 0)),   # weight tile (streamed)
    ]
    cparams = pltpu.CompilerParams(
        dimension_semantics=("parallel", "arbitrary"),
        vmem_limit_bytes=budget)

    if mode == "slab":
        out = pl.pallas_call(
            kernel,
            out_shape=jax.ShapeDtypeStruct((m_pad, v_pad), out_dtype),
            grid_spec=pltpu.PrefetchScalarGridSpec(
                num_scalar_prefetch=0, grid=(ni, nj),
                in_specs=in_specs,
                out_specs=pl.BlockSpec((tm, v_pad), lambda i, j: (i, 0)),
                scratch_shapes=[pltpu.VMEM((tm, 1), jnp.float32),   # running max
                                pltpu.VMEM((tm, 1), jnp.float32)]), # running sum-exp
            compiler_params=cparams,
        )(x2, w)
    else:
        # Pass 1: per-(i, j) raw-logit tiles + per-row logsumexp.
        raw, lse = pl.pallas_call(
            kernel,
            out_shape=(jax.ShapeDtypeStruct((m_pad, v_pad), out_dtype),
                       jax.ShapeDtypeStruct((m_pad, 1), jnp.float32)),
            grid_spec=pltpu.PrefetchScalarGridSpec(
                num_scalar_prefetch=0, grid=(ni, nj),
                in_specs=in_specs,
                out_specs=[pl.BlockSpec((tm, tn), lambda i, j: (i, j)),
                           pl.BlockSpec((tm, 1), lambda i, j: (i, 0))],
                scratch_shapes=[pltpu.VMEM((tm, 1), jnp.float32),
                                pltpu.VMEM((tm, 1), jnp.float32)]),
            compiler_params=cparams,
        )(x2, w)

        # Pass 2: cheap elementwise `raw - lse` over lane-dense tiles.
        tn2 = tn
        while (v_pad % (tn2 * 2) == 0
               and 4 * tm * (tn2 * 2) * out_bytes <= budget // 2):
            tn2 *= 2
        out = pl.pallas_call(
            _sub_lse_kernel,
            out_shape=jax.ShapeDtypeStruct((m_pad, v_pad), out_dtype),
            grid_spec=pltpu.PrefetchScalarGridSpec(
                num_scalar_prefetch=0, grid=(m_pad // tm, v_pad // tn2),
                in_specs=[pl.BlockSpec((tm, tn2), lambda i, j: (i, j)),
                          pl.BlockSpec((tm, 1), lambda i, j: (i, 0))],
                out_specs=pl.BlockSpec((tm, tn2), lambda i, j: (i, j))),
            compiler_params=pltpu.CompilerParams(
                dimension_semantics=("parallel", "parallel"),
                vmem_limit_bytes=budget),
        )(raw, lse)

    out = out[:m, :vocab]
    return out.reshape(*lead, vocab)


def _reference(x, weight):
    """Same precision path as the kernel: bf16 matmul, f32 accumulate/softmax."""
    logits = jnp.einsum(
        "...h,vh->...v",
        x.astype(jnp.bfloat16), weight.astype(jnp.bfloat16),
        preferred_element_type=jnp.float32)
    return jax.nn.log_softmax(logits, axis=-1)


if __name__ == "__main__":
    batch, seq, hidden, vocab = 2, 8, 32, 128

    key = jax.random.PRNGKey(0)
    kx, kw, kx2, kw2, kw3, kx3 = jax.random.split(key, 6)
    x = jax.random.normal(kx, (batch, seq, hidden), dtype=jnp.float32)
    # nn.Linear(hidden, vocab, bias=False) weight -> shape (vocab, hidden).
    weight = jax.random.normal(kw, (vocab, hidden), dtype=jnp.float32) * 0.1

    # Case 1: default (single-pass resident-slab mode).
    out = jax.block_until_ready(generator_forward(x, weight))
    assert out.shape == (batch, seq, vocab)
    ref = _reference(x, weight)
    assert jnp.allclose(out, ref, atol=2e-3, rtol=2e-3), "mismatch vs bf16 reference"
    ref_f32 = jax.nn.log_softmax(x @ weight.T, axis=-1)
    assert jnp.allclose(out, ref_f32, atol=5e-2, rtol=5e-2), "mismatch vs f32 reference"

    # Case 2: padding/masking paths (M not multiple of 8, vocab not multiple
    # of the 128-lane tile).
    x_b = jax.random.normal(kx2, (3, 5, hidden), dtype=jnp.float32)
    w_b = jax.random.normal(kw2, (100, hidden), dtype=jnp.float32) * 0.1
    out_b = jax.block_until_ready(generator_forward(x_b, w_b))
    assert out_b.shape == (3, 5, 100)
    assert jnp.allclose(out_b, _reference(x_b, w_b), atol=2e-3, rtol=2e-3), \
        "mismatch vs bf16 reference (padded case)"

    # Case 3: force the two-pass (per-tile raw logits + lse) path with
    # multiple row and vocab tiles — the large-vocab / v7x code path.
    vocab_c = 384
    x_c = jax.random.normal(kx3, (4, 8, hidden), dtype=jnp.float32)
    w_c = jax.random.normal(kw3, (vocab_c, hidden), dtype=jnp.float32) * 0.1
    out_c = jax.block_until_ready(
        generator_forward(x_c, w_c, tm=16, tn=128, force_two_pass=True))
    assert out_c.shape == (4, 8, vocab_c)
    assert jnp.allclose(out_c, _reference(x_c, w_c), atol=2e-3, rtol=2e-3), \
        "mismatch vs bf16 reference (two-pass case)"

    # Case 4: slab mode with several vocab tiles (online softmax + in-slab
    # finalize loop).
    out_d = jax.block_until_ready(generator_forward(x_c, w_c, tn=128))
    assert jnp.allclose(out_d, _reference(x_c, w_c), atol=2e-3, rtol=2e-3), \
        "mismatch vs bf16 reference (multi-tile slab case)"

    print("KERNEL_OK")
</pallas_src>

<mosaic_0001>
module attributes {stable_mosaic.version = 11 : i64} {
  func.func @kernel(%arg0: i32, %arg1: i32, %arg2: memref<16x32xbf16, #tpu.memory_space<vmem>>, %arg3: memref<128x32xbf16, #tpu.memory_space<vmem>>, %arg4: memref<16x128xf32, #tpu.memory_space<vmem>>, %arg5: memref<16x1xf32, #tpu.memory_space<vmem>>, %arg6: memref<16x1xf32, #tpu.memory_space<vmem>>) attributes {dimension_semantics = [#tpu.dimension_semantics<parallel>, #tpu.dimension_semantics<arbitrary>], iteration_bounds = array<i64: 1, 1>, scalar_prefetch = 0 : i64, scratch_operands = 2 : i64, tpu.core_type = #tpu.core_type<tc>, window_params = [{transform_indices = @transform_0, window_bounds = array<i64: 16, 32>}, {transform_indices = @transform_1, window_bounds = array<i64: 128, 32>}, {transform_indices = @transform_2, window_bounds = array<i64: 16, 128>}]} {
    %c0_i32 = arith.constant 0 : i32
    %0 = arith.cmpi eq, %arg1, %c0_i32 : i32
    %1 = arith.extui %0 : i1 to i32
    %c0_i32_0 = arith.constant 0 : i32
    %2 = arith.cmpi ne, %1, %c0_i32_0 : i32
    scf.if %2 {
      %cst_17 = arith.constant -1.000000e+30 : f32
      %29 = vector.broadcast %cst_17 : f32 to vector<16x1xf32>
      %c0_18 = arith.constant 0 : index
      %c0_19 = arith.constant 0 : index
      %30 = vector.load %arg5[%c0_18, %c0_19] : memref<16x1xf32, #tpu.memory_space<vmem>>, vector<16x1xf32>
      tpu.vector_store %arg5[%c0_18, %c0_19], %29 {strides = array<i32>} : memref<16x1xf32, #tpu.memory_space<vmem>>, vector<16x1xf32>,
      %cst_20 = arith.constant 0.000000e+00 : f32
      %31 = vector.broadcast %cst_20 : f32 to vector<16x1xf32>
      %c0_21 = arith.constant 0 : index
      %c0_22 = arith.constant 0 : index
      %32 = vector.load %arg6[%c0_21, %c0_22] : memref<16x1xf32, #tpu.memory_space<vmem>>, vector<16x1xf32>
      tpu.vector_store %arg6[%c0_21, %c0_22], %31 {strides = array<i32>} : memref<16x1xf32, #tpu.memory_space<vmem>>, vector<16x1xf32>,
    } else {
    }
    %c0 = arith.constant 0 : index
    %c0_1 = arith.constant 0 : index
    %3 = vector.load %arg2[%c0, %c0_1] : memref<16x32xbf16, #tpu.memory_space<vmem>>, vector<16x32xbf16>
    %c0_2 = arith.constant 0 : index
    %c0_3 = arith.constant 0 : index
    %4 = vector.load %arg3[%c0_2, %c0_3] : memref<128x32xbf16, #tpu.memory_space<vmem>>, vector<128x32xbf16>
    %cst = arith.constant dense<0.000000e+00> : vector<16x128xf32>
    %5 = tpu.matmul %3, %4, %cst {dimension_numbers = #tpu.dot_dimension_numbers<[1], [1], [0], [0], [0, 0, 1, 0], [], []>} : vector<16x32xbf16>, vector<128x32xbf16>, vector<16x128xf32> -> vector<16x128xf32>
    %c0_4 = arith.constant 0 : index
    %c0_5 = arith.constant 0 : index
    %6 = vector.load %arg5[%c0_4, %c0_5] : memref<16x1xf32, #tpu.memory_space<vmem>>, vector<16x1xf32>
    %cst_6 = arith.constant dense<0xFF800000> : vector<16xf32>
    %7 = vector.multi_reduction <maximumf>, %5, %cst_6 [1] : vector<16x128xf32> to vector<16xf32>
    %8 = vector.shape_cast %7 : vector<16xf32> to vector<16x1xf32>
    %9 = arith.maximumf %6, %8 : vector<16x1xf32>
    %c0_7 = arith.constant 0 : index
    %c0_8 = arith.constant 0 : index
    %10 = vector.load %arg6[%c0_7, %c0_8] : memref<16x1xf32, #tpu.memory_space<vmem>>, vector<16x1xf32>
    %11 = arith.subf %6, %9 : vector<16x1xf32>
    %12 = math.exp %11 : vector<16x1xf32>
    %13 = arith.mulf %10, %12 : vector<16x1xf32>
    %14 = vector.broadcast %9 : vector<16x1xf32> to vector<16x128xf32>
    %15 = arith.subf %5, %14 : vector<16x128xf32>
    %16 = math.exp %15 : vector<16x128xf32>
    %cst_9 = arith.constant dense<0.000000e+00> : vector<16xf32>
    %17 = vector.multi_reduction <add>, %16, %cst_9 [1] : vector<16x128xf32> to vector<16xf32>
    %18 = vector.shape_cast %17 : vector<16xf32> to vector<16x1xf32>
    %19 = arith.addf %13, %18 : vector<16x1xf32>
    %c0_10 = arith.constant 0 : index
    %c0_11 = arith.constant 0 : index
    %20 = vector.load %arg6[%c0_10, %c0_11] : memref<16x1xf32, #tpu.memory_space<vmem>>, vector<16x1xf32>
    tpu.vector_store %arg6[%c0_10, %c0_11], %19 {strides = array<i32>} : memref<16x1xf32, #tpu.memory_space<vmem>>, vector<16x1xf32>,
    %c0_12 = arith.constant 0 : index
    %c0_13 = arith.constant 0 : index
    %21 = vector.load %arg5[%c0_12, %c0_13] : memref<16x1xf32, #tpu.memory_space<vmem>>, vector<16x1xf32>
    tpu.vector_store %arg5[%c0_12, %c0_13], %9 {strides = array<i32>} : memref<16x1xf32, #tpu.memory_space<vmem>>, vector<16x1xf32>,
    %c128_i32 = arith.constant 128 : i32
    %22 = arith.muli %arg1, %c128_i32 : i32
    %23 = tpu.assume_multiple %22, 128 : i32
    %c0_14 = arith.constant 0 : index
    %24 = arith.index_cast %23 : i32 to index
    %25 = vector.load %arg4[%c0_14, %24] : memref<16x128xf32, #tpu.memory_space<vmem>>, vector<16x128xf32>
    tpu.vector_store %arg4[%c0_14, %24], %5 {strides = array<i32>} : memref<16x128xf32, #tpu.memory_space<vmem>>, vector<16x128xf32>,
    %c0_i32_15 = arith.constant 0 : i32
    %26 = arith.cmpi eq, %arg1, %c0_i32_15 : i32
    %27 = arith.extui %26 : i1 to i32
    %c0_i32_16 = arith.constant 0 : i32
    %28 = arith.cmpi ne, %27, %c0_i32_16 : i32
    scf.if %28 {
      %c0_17 = arith.constant 0 : index
      %c0_18 = arith.constant 0 : index
      %29 = vector.load %arg5[%c0_17, %c0_18] : memref<16x1xf32, #tpu.memory_space<vmem>>, vector<16x1xf32>
      %c0_19 = arith.constant 0 : index
      %c0_20 = arith.constant 0 : index
      %30 = vector.load %arg6[%c0_19, %c0_20] : memref<16x1xf32, #tpu.memory_space<vmem>>, vector<16x1xf32>
      %31 = math.log %30 : vector<16x1xf32>
      %32 = arith.addf %29, %31 : vector<16x1xf32>
      %c0_i32_21 = arith.constant 0 : i32
      %c128_i32_22 = arith.constant 128 : i32
      %33 = arith.muli %c0_i32_21, %c128_i32_22 : i32
      %34 = tpu.assume_multiple %33, 128 : i32
      %c0_23 = arith.constant 0 : index
      %35 = arith.index_cast %34 : i32 to index
      %36 = vector.load %arg4[%c0_23, %35] : memref<16x128xf32, #tpu.memory_space<vmem>>, vector<16x128xf32>
      %37 = vector.broadcast %32 : vector<16x1xf32> to vector<16x128xf32>
      %38 = arith.subf %36, %37 : vector<16x128xf32>
      %c0_24 = arith.constant 0 : index
      %39 = arith.index_cast %34 : i32 to index
      %40 = vector.load %arg4[%c0_24, %39] : memref<16x128xf32, #tpu.memory_space<vmem>>, vector<16x128xf32>
      tpu.vector_store %arg4[%c0_24, %39], %38 {strides = array<i32>} : memref<16x128xf32, #tpu.memory_space<vmem>>, vector<16x128xf32>,
      %c1_i32 = arith.constant 1 : i32
    } else {
    }
    return
  }
  func.func @transform_0(%arg0: i32, %arg1: i32) -> (i32, i32) {
    %c0_i32 = arith.constant 0 : i32
    %c0_i32_0 = arith.constant 0 : i32
    return %arg0, %c0_i32 : i32, i32
  }
  func.func @transform_1(%arg0: i32, %arg1: i32) -> (i32, i32) {
    %c0_i32 = arith.constant 0 : i32
    %c0_i32_0 = arith.constant 0 : i32
    return %arg1, %c0_i32 : i32, i32
  }
  func.func @transform_2(%arg0: i32, %arg1: i32) -> (i32, i32) {
    %c0_i32 = arith.constant 0 : i32
    %c0_i32_0 = arith.constant 0 : i32
    return %arg0, %c0_i32 : i32, i32
  }
}

</mosaic_0001>

<llo_original>
// kernel: tpu_custom_call.1
$region0: #{tpu_custom_call.1}
  #allocation0 [shape = 'u32[]', space=smem, size = 0x4, offset = 0x4, fixed_abs, tag = 'smem constant byte address 0x4 - core index']
  #allocation1 [shape = 'u32[144,128]{1,0:T(1,128)}', space=vmem, size = 0x12000, scoped, tag = 'internal scratch']
  #allocation2 [shape = 'f32[16,1]{1,0:T(8,128)}', space=vmem, size = 0x2000, scoped, tag = 'scratch operand']
  #allocation3 [shape = 'f32[16,1]{1,0:T(8,128)}', space=vmem, size = 0x2000, scoped, tag = 'scratch operand']
  %s0 = inlined_call_operand.vmem [shape: bf16[16,32], index: 0, kind: input, shape index: {}]
  %s1 = inlined_call_operand.vmem [shape: bf16[128,32], index: 1, kind: input, shape index: {}]
  %s2 = inlined_call_operand.hbm [shape: f32[16,128], index: 2, kind: output, shape index: {}]
  %s3 = sld [smem:[#allocation0]]
  $region26: #{tpu_custom_call.1} parent=0
    _
  %s5 = ssub.s32 1, %s3
  %s6 = scalar_select 0, %s5, %s3
  $region1: #{tpu_custom_call.1} parent=0
    #allocation4 [shape = 'u8[8192]{0}', space=vmem, size = 0x2000, scoped, tag = 'output window, operand 0, single buffered']
    #allocation5 [shape = 's32[1]{0}', space=sflag, size = 0x4, scoped, tag = 'scoped memory for tpu_custom_call.1']
    %7 = vsyncpa [#allocation5], 0
    // Predicated region
    $region2: #{tpu_custom_call.1} parent=1 // pred_check
      _
    $region3: #{tpu_custom_call.1} parent=1 // pred_check_branch
      %9 = sbr.rel (0) target = $region5
    $region4: #{tpu_custom_call.1} parent=1 // pred_region
      _
    $region5: #{tpu_custom_call.1} parent=1 // pred_fallthru
      _
    // Predicated region
    $region6: #{tpu_custom_call.1} parent=1 // pred_check
      _
    $region7: #{tpu_custom_call.1} parent=1 // pred_check_branch
      %11 = sbr.rel (0) target = $region9
    $region8: #{tpu_custom_call.1} parent=1 // pred_region
      _
    $region9: #{tpu_custom_call.1} parent=1 // pred_fallthru
      _
    %p13 = scmp.eq.s32.totalorder 0, 0
    // Predicated region
    $region10: #{tpu_custom_call.1} parent=1 // pred_check
      %p14 = pneg %p13
    $region11: #{tpu_custom_call.1} parent=1 // pred_check_branch
      %16 = sbr.rel (%p14) target = $region13
    $region12: #{tpu_custom_call.1} parent=1 // pred_region
      %vm17 = vcmask 7168
      %18 = vst.msk [vmem:[#allocation2] sm:$0xff] %vm17, -1e+30
      %19 = vst.msk [vmem:[#allocation2 + $0x8] sm:$0xff] %vm17, -1e+30
      %20 = vst.msk [vmem:[#allocation3] sm:$0xff] %vm17, 0.0
      %21 = vst.msk [vmem:[#allocation3 + $0x8] sm:$0xff] %vm17, 0.0
    $region13: #{tpu_custom_call.1} parent=1 // pred_fallthru
      _
    %v22 = vld [vmem:[%s0] sm:$0xf]
    %v23 = vld [vmem:[%s0 + $0x4] sm:$0xf]
    %v24 = vld [vmem:[%s1] sm:$0xf]
    %v25 = vld [vmem:[%s1 + $0x4] sm:$0xf]
    %v26 = vld [vmem:[%s1 + $0x8] sm:$0xf]
    %v27 = vld [vmem:[%s1 + $0xc] sm:$0xf]
    %v28 = vld [vmem:[%s1 + $0x10] sm:$0xf]
    %v29 = vld [vmem:[%s1 + $0x14] sm:$0xf]
    %v30 = vld [vmem:[%s1 + $0x18] sm:$0xf]
    %v31 = vld [vmem:[%s1 + $0x1c] sm:$0xf]
    %v32 = vld [vmem:[%s1 + $0x20] sm:$0xf]
    %v33 = vld [vmem:[%s1 + $0x24] sm:$0xf]
    %v34 = vld [vmem:[%s1 + $0x28] sm:$0xf]
    %v35 = vld [vmem:[%s1 + $0x2c] sm:$0xf]
    %v36 = vld [vmem:[%s1 + $0x30] sm:$0xf]
    %v37 = vld [vmem:[%s1 + $0x34] sm:$0xf]
    %v38 = vld [vmem:[%s1 + $0x38] sm:$0xf]
    %v39 = vld [vmem:[%s1 + $0x3c] sm:$0xf]
    %v42 = vunpack.c.l.b16 %v22
    %v43 = vunpack.c.l.b16 %v23
    %v44 = vpack.c.b16 %v43, %v42
    %v61 = vunpack.c.l.b16 %v24
    %v62 = vunpack.c.l.b16 %v25
    %v63 = vunpack.c.l.b16 %v26
    %v64 = vunpack.c.l.b16 %v27
    %v65 = vunpack.c.l.b16 %v28
    %v66 = vunpack.c.l.b16 %v29
    %v67 = vunpack.c.l.b16 %v30
    %v68 = vunpack.c.l.b16 %v31
    %v69 = vunpack.c.l.b16 %v32
    %v70 = vunpack.c.l.b16 %v33
    %v71 = vunpack.c.l.b16 %v34
    %v72 = vunpack.c.l.b16 %v35
    %v73 = vunpack.c.l.b16 %v36
    %v74 = vunpack.c.l.b16 %v37
    %v75 = vunpack.c.l.b16 %v38
    %v76 = vunpack.c.l.b16 %v39
    %v77 = vpack.c.b16 %v62, %v61
    %v78 = vpack.c.b16 %v64, %v63
    %v79 = vpack.c.b16 %v66, %v65
    %v80 = vpack.c.b16 %v68, %v67
    %v81 = vpack.c.b16 %v70, %v69
    %v82 = vpack.c.b16 %v72, %v71
    %v83 = vpack.c.b16 %v74, %v73
    %v84 = vpack.c.b16 %v76, %v75
    %vm85 = vcmask 261120
    %v87 = vsel %vm85, %v44, 0
    %v90 = vsel %vm85, %v77, 0
    %v93 = vsel %vm85, %v78, 0
    %v96 = vsel %vm85, %v79, 0
    %v99 = vsel %vm85, %v80, 0
    %v102 = vsel %vm85, %v81, 0
    %v105 = vsel %vm85, %v82, 0
    %v108 = vsel %vm85, %v83, 0
    %v111 = vsel %vm85, %v84, 0
    %113 = vmatprep.subr.bf16.mxu0 0
    %114 = vmatpush1.bf16.xpose.msra.mxu0 %v90
    %115 = vmatprep.subr.bf16.mxu0 0
    %116 = vmatpush1.bf16.xpose.msra.mxu0 %v93
    %117 = vmatprep.subr.bf16.mxu0 0
    %118 = vmatpush1.bf16.xpose.msra.mxu0 %v96
    %119 = vmatprep.subr.bf16.mxu0 0
    %120 = vmatpush1.bf16.xpose.msra.mxu0 %v99
    %121 = vmatprep.subr.bf16.mxu0 0
    %122 = vmatpush1.bf16.xpose.msra.mxu0 %v102
    %123 = vmatprep.subr.bf16.mxu0 0
    %124 = vmatpush1.bf16.xpose.msra.mxu0 %v105
    %125 = vmatprep.subr.bf16.mxu0 0
    %126 = vmatpush1.bf16.xpose.msra.mxu0 %v108
    %127 = vmatprep.subr.bf16.mxu0 0
    %128 = vmatpush1.bf16.xpose.msra.mxu0 %v111
    %129 = vmatprep.subr.bf16.mxu0 0
    %130 = vmatpush1.bf16.xpose.msra.mxu0 0
    %131 = vmatprep.subr.bf16.mxu0 0
    %132 = vmatpush1.bf16.xpose.msra.mxu0 0
    %133 = vmatprep.subr.bf16.mxu0 0
    %134 = vmatpush1.bf16.xpose.msra.mxu0 0
    %135 = vmatprep.subr.bf16.mxu0 0
    %136 = vmatpush1.bf16.xpose.msra.mxu0 0
    %137 = vmatprep.subr.bf16.mxu0 0
    %138 = vmatpush1.bf16.xpose.msra.mxu0 0
    %139 = vmatprep.subr.bf16.mxu0 0
    %140 = vmatpush1.bf16.xpose.msra.mxu0 0
    %141 = vmatprep.subr.bf16.mxu0 0
    %142 = vmatpush1.bf16.xpose.msra.mxu0 0
    %143 = vmatprep.subr.bf16.mxu0 0
    %144 = vmatpush1.bf16.xpose.msra.mxu0 0
    %145 = vmatprep.mubr.bf16.mxu0 0
    %146 = vmatmul.mubr.bf16.gmra.mrb[0].mxu0 %v87
    %v147 = vpop.f32.mrb[0].mxu0
    %v148 = vadd.f32 0.0, %v147
    %v149 = vpop.f32.mrb[0].mxu0
    %v150 = vpop.f32.mrb[0].mxu0
    %v151 = vadd.f32 0.0, %v150
    %v152 = vpop.f32.mrb[0].mxu0
    %153 = vdwg.mxu0
    %v154 = vld [vmem:[#allocation2] sm:$0xff]
    %v155 = vld [vmem:[#allocation2 + $0x8] sm:$0xff]
    %156 = vmax.xlane.f32.xlu0 %v148
    %v157 = vpop.xlane.xlu0 %156
    %158 = vmax.xlane.f32.xlu0 %v151
    %v159 = vpop.xlane.xlu0 %158
    %v160 = vmax.f32 %v154, %v157
    %v161 = vmax.f32 %v155, %v159
    %v162 = vld [vmem:[#allocation3] sm:$0xff]
    %v163 = vld [vmem:[#allocation3 + $0x8] sm:$0xff]
    %v164 = vsub.f32 %v154, %v160
    %v165 = vsub.f32 %v155, %v161
    %v166 = vmul.f32 %v164, 1.442695
    %v167 = vpow.pop %v166
    %v168 = vmul.f32 %v165, 1.442695
    %v169 = vpow.pop %v168
    %v170 = vmul.f32 %v162, %v167
    %v171 = vmul.f32 %v163, %v169
    %173 = vset.pattern.permute.xlu0 0
    %174 = vperm.xlu0 %173, %v160
    %v175 = vpop.permute.xlu0 %174
    %178 = vset.pattern.permute.xlu0 0
    %179 = vperm.xlu0 %178, %v161
    %v180 = vpop.permute.xlu0 %179
    %v182 = vsub.f32 %v148, %v175
    %v183 = vsub.f32 %v151, %v180
    %v184 = vmul.f32 %v182, 1.442695
    %v185 = vpow.pop %v184
    %v186 = vmul.f32 %v183, 1.442695
    %v187 = vpow.pop %v186
    %188 = vadd.xlane.f32.xlu0 %v185
    %v189 = vpop.xlane.xlu0 %188
    %190 = vadd.xlane.f32.xlu0 %v187
    %v191 = vpop.xlane.xlu0 %190
    %v192 = vadd.f32 %v170, %v189
    %v193 = vadd.f32 %v171, %v191
    %vm194 = vcmask 7168
    %195 = vst.msk [vmem:[#allocation3] sm:$0xff] %vm194, %v192
    %196 = vst.msk [vmem:[#allocation3 + $0x8] sm:$0xff] %vm194, %v193
    %197 = vst.msk [vmem:[#allocation2] sm:$0xff] %vm194, %v160
    %198 = vst.msk [vmem:[#allocation2 + $0x8] sm:$0xff] %vm194, %v161
    %s199 = smul.u32 0, 128
    %s200 = sshra.s32 %s199, 7
    %s201 = sand.u32 %s199, 127
    %s202 = scalar_lea.vmem [#allocation4], %s200
    %203 = vst [vmem:[%s202] sm:$0xff] %v148
    %204 = vst [vmem:[%s202 + $0x8] sm:$0xff] %v151
    // Predicated region
    $region14: #{tpu_custom_call.1} parent=1 // pred_check
      %p205 = pneg %p13
    $region15: #{tpu_custom_call.1} parent=1 // pred_check_branch
      %207 = sbr.rel (%p205) target = $region17
    $region16: #{tpu_custom_call.1} parent=1 // pred_region
      %v208 = vld [vmem:[#allocation2] sm:$0xff]
      %v209 = vld [vmem:[#allocation2 + $0x8] sm:$0xff]
      %v210 = vld [vmem:[#allocation3] sm:$0xff]
      %v211 = vld [vmem:[#allocation3 + $0x8] sm:$0xff]
      %v212 = vlog2.pop %v210
      %v213 = vmul.f32 %v212, 0.6931472
      %v214 = vlog2.pop %v211
      %v215 = vmul.f32 %v214, 0.6931472
      %v216 = vadd.f32 %v208, %v213
      %v217 = vadd.f32 %v209, %v215
      %v218 = vld [vmem:[#allocation4] sm:$0xff]
      %v219 = vld [vmem:[#allocation4 + $0x8] sm:$0xff]
      %221 = vset.pattern.permute.xlu0 0
      %222 = vperm.xlu0 %221, %v216
      %v223 = vpop.permute.xlu0 %222
      %226 = vset.pattern.permute.xlu0 0
      %227 = vperm.xlu0 %226, %v217
      %v228 = vpop.permute.xlu0 %227
      %v230 = vsub.f32 %v218, %v223
      %v231 = vsub.f32 %v219, %v228
      %232 = vst [vmem:[#allocation4] sm:$0xff] %v230
      %233 = vst [vmem:[#allocation4 + $0x8] sm:$0xff] %v231
    $region17: #{tpu_custom_call.1} parent=1 // pred_fallthru
      _
    // Predicated region
    $region18: #{tpu_custom_call.1} parent=1 // pred_check
      _
    $region19: #{tpu_custom_call.1} parent=1 // pred_check_branch
      %235 = sbr.rel (0) target = $region21
    $region20: #{tpu_custom_call.1} parent=1 // pred_region
      %s237 = ssub.s32 256, 256
      %238 = vsyncadd [#allocation5], %s237
      %s239 = sshll.u32 [#allocation4], 4
      %s240 = int_to_ptr.vmem [resolvable:$true] %s239
      %245 = dma.vmem_to_hbm [thread:$0]  %s240, 256, %s2, [#allocation5], 128, 128, 8
    $region21: #{tpu_custom_call.1} parent=1 // pred_fallthru
      _
    // Predicated region
    $region22: #{tpu_custom_call.1} parent=1 // pred_check
      _
    $region23: #{tpu_custom_call.1} parent=1 // pred_check_branch
      %247 = sbr.rel (0) target = $region25
    $region24: #{tpu_custom_call.1} parent=1 // pred_region
      %248 = dma.done [#allocation5], 256
    $region25: #{tpu_custom_call.1} parent=1 // pred_fallthru
      _
    %249 = vsyncpa [#allocation5], 1

</llo_original>
